<compile_context>
chip_gen: v6e
topology: v6e:2x2x1
jax: 0.10.0
libtpu: 0.0.40
codegen_flags: <defaults>
</compile_context>

<pallas_src>
import jax
import jax.numpy as jnp
from jax import lax
from jax.experimental import pallas as pl
from jax.experimental.pallas import tpu as pltpu

INV_SQRT2 = 0.7071067811865476
DROPOUT_P = 0.1
LN_EPS = 1e-5


def decoder_kernel(adj_ref, x_ref, w_ref, b_ref, g_ref, bt_ref, u_ref,
                   out_ref):
    """Fused 3x (GCNConv -> LayerNorm -> GELU -> Dropout)."""
    num_layers = w_ref.shape[0]          # static (3)

    adj = adj_ref[...]                   # (N, N) normalized adjacency
    h = x_ref[...].astype(jnp.float32)   # (N, D) node features

    # Static unroll over layers: W is only L*D*D*4 = 12 KiB, so indexing with
    # static layer indices keeps everything resident and lets the scheduler
    # keep h in vregs across the whole pipeline.
    for layer in range(num_layers):
        # --- GCNConv: X' = A_hat @ (X @ W) + b ----------------------------
        hw = jnp.dot(h, w_ref[layer], preferred_element_type=jnp.float32)
        h = jnp.dot(adj, hw, preferred_element_type=jnp.float32) + b_ref[layer]

        # --- LayerNorm over the embedding (last) dim ----------------------
        mean = jnp.mean(h, axis=-1, keepdims=True)
        cent = h - mean
        var = jnp.mean(cent * cent, axis=-1, keepdims=True)
        h = cent * lax.rsqrt(var + LN_EPS)
        h = h * g_ref[layer] + bt_ref[layer]

        # --- GELU (exact, erf form; matches nn.GELU default) --------------
        h = 0.5 * h * (1.0 + lax.erf(h * INV_SQRT2))

        # --- Dropout p=0.1 (training semantics of F.dropout) --------------
        keep = u_ref[layer] >= DROPOUT_P
        h = jnp.where(keep, h * (1.0 / (1.0 - DROPOUT_P)), 0.0)

    out_ref[...] = h.astype(out_ref.dtype)


def graph_decoder_norm(x, adj_norm, W, b, gamma, beta, dropout_u):
    """x: (N, D) node features, adj_norm: (N, N) normalized adjacency,
    W: (L, D, D), b/gamma/beta: (L, 1, D), dropout_u: (L, N, D) uniforms."""
    N, D = x.shape
    L = W.shape[0]

    flops = L * (2 * N * D * D + 2 * N * N * D)
    transcendentals = L * N * D
    bytes_accessed = 4 * (N * N + N * D + L * D * D + 3 * L * D
                          + L * N * D + N * D)

    return pl.pallas_call(
        decoder_kernel,
        out_shape=jax.ShapeDtypeStruct((N, D), jnp.float32),
        cost_estimate=pl.CostEstimate(
            flops=flops,
            transcendentals=transcendentals,
            bytes_accessed=bytes_accessed,
        ),
    )(adj_norm, x, W, b, gamma, beta, dropout_u)


def gcn_normalized_adjacency(edge_index, num_nodes):
    """Dense symmetric-normalized adjacency with self loops (GCNConv norm)."""
    src, dst = edge_index
    A = jnp.zeros((num_nodes, num_nodes), jnp.float32)
    A = A.at[src, dst].set(1.0)
    A = jnp.maximum(A, A.T)                               # undirected
    A = A + jnp.eye(num_nodes, dtype=jnp.float32)         # add self loops
    deg = A.sum(axis=1)
    dinv = lax.rsqrt(deg)
    return A * dinv[:, None] * dinv[None, :]


if __name__ == "__main__":
    # Small config consistent with the module:
    #   embedding_size = 32, num_layers = 4  ->  3 conv layers, N = 16 nodes.
    embedding_size = 32
    num_layers = 4
    num_conv_layers = num_layers - 1
    num_nodes = 16
    num_edges = 40

    key = jax.random.PRNGKey(0)
    k_x, k_e, k_w, k_d = jax.random.split(key, 4)

    # Node features z and graph (layer_data -> edge_index).
    x = jax.random.normal(k_x, (num_nodes, embedding_size), jnp.float32)
    edge_index = jax.random.randint(k_e, (2, num_edges), 0, num_nodes,
                                    dtype=jnp.int32)
    adj_norm = gcn_normalized_adjacency(edge_index, num_nodes)

    # Deterministic parameter init (GCNConv weight/bias, LayerNorm affine).
    W = (jax.random.normal(
        k_w, (num_conv_layers, embedding_size, embedding_size), jnp.float32)
        * (1.0 / jnp.sqrt(embedding_size)))
    b = jnp.zeros((num_conv_layers, 1, embedding_size), jnp.float32)
    gamma = jnp.ones((num_conv_layers, 1, embedding_size), jnp.float32)
    beta = jnp.zeros((num_conv_layers, 1, embedding_size), jnp.float32)

    # One uniform draw for all layers' dropout masks.
    dropout_u = jax.random.uniform(
        k_d, (num_conv_layers, num_nodes, embedding_size), jnp.float32)

    out = graph_decoder_norm(x, adj_norm, W, b, gamma, beta, dropout_u)
    jax.block_until_ready(out)
    assert out.shape == (num_nodes, embedding_size)
    assert bool(jnp.all(jnp.isfinite(out)))
    print("KERNEL_OK")
</pallas_src>

<mosaic_0001>
module attributes {stable_mosaic.version = 11 : i64} {
  func.func @decoder_kernel(%arg0: memref<16x16xf32, #tpu.memory_space<vmem>>, %arg1: memref<16x32xf32, #tpu.memory_space<vmem>>, %arg2: memref<3x32x32xf32, #tpu.memory_space<vmem>>, %arg3: memref<3x1x32xf32, #tpu.memory_space<vmem>>, %arg4: memref<3x1x32xf32, #tpu.memory_space<vmem>>, %arg5: memref<3x1x32xf32, #tpu.memory_space<vmem>>, %arg6: memref<3x16x32xf32, #tpu.memory_space<vmem>>, %arg7: memref<16x32xf32, #tpu.memory_space<vmem>>) attributes {dimension_semantics = [], scalar_prefetch = 0 : i64, scratch_operands = 0 : i64, tpu.core_type = #tpu.core_type<tc>} {
    %c0 = arith.constant 0 : index
    %c0_0 = arith.constant 0 : index
    %0 = vector.load %arg0[%c0, %c0_0] : memref<16x16xf32, #tpu.memory_space<vmem>>, vector<16x16xf32>
    %c0_1 = arith.constant 0 : index
    %c0_2 = arith.constant 0 : index
    %1 = vector.load %arg1[%c0_1, %c0_2] : memref<16x32xf32, #tpu.memory_space<vmem>>, vector<16x32xf32>
    %c0_3 = arith.constant 0 : index
    %c0_4 = arith.constant 0 : index
    %c0_5 = arith.constant 0 : index
    %2 = vector.load %arg2[%c0_3, %c0_4, %c0_5] : memref<3x32x32xf32, #tpu.memory_space<vmem>>, vector<1x32x32xf32>
    %3 = vector.shape_cast %2 : vector<1x32x32xf32> to vector<32x32xf32>
    %cst = arith.constant dense<0.000000e+00> : vector<16x32xf32>
    %4 = tpu.matmul %1, %3, %cst {dimension_numbers = #tpu.dot_dimension_numbers<[1], [0], [0], [1], [0, 0, 1, 1], [], []>} : vector<16x32xf32>, vector<32x32xf32>, vector<16x32xf32> -> vector<16x32xf32>
    %cst_6 = arith.constant dense<0.000000e+00> : vector<16x32xf32>
    %5 = tpu.matmul %0, %4, %cst_6 {dimension_numbers = #tpu.dot_dimension_numbers<[1], [0], [0], [1], [0, 0, 1, 1], [], []>} : vector<16x16xf32>, vector<16x32xf32>, vector<16x32xf32> -> vector<16x32xf32>
    %c0_7 = arith.constant 0 : index
    %c0_8 = arith.constant 0 : index
    %c0_9 = arith.constant 0 : index
    %6 = vector.load %arg3[%c0_7, %c0_8, %c0_9] : memref<3x1x32xf32, #tpu.memory_space<vmem>>, vector<1x1x32xf32>
    %7 = vector.shape_cast %6 : vector<1x1x32xf32> to vector<1x32xf32>
    %8 = vector.broadcast %7 : vector<1x32xf32> to vector<16x32xf32>
    %9 = arith.addf %5, %8 : vector<16x32xf32>
    %cst_10 = arith.constant dense<0.000000e+00> : vector<16xf32>
    %10 = vector.multi_reduction <add>, %9, %cst_10 [1] : vector<16x32xf32> to vector<16xf32>
    %11 = vector.shape_cast %10 : vector<16xf32> to vector<16x1xf32>
    %cst_11 = arith.constant 3.200000e+01 : f32
    %12 = vector.broadcast %cst_11 : f32 to vector<16x1xf32>
    %13 = arith.divf %11, %12 : vector<16x1xf32>
    %14 = vector.broadcast %13 : vector<16x1xf32> to vector<16x32xf32>
    %15 = arith.subf %9, %14 : vector<16x32xf32>
    %16 = arith.mulf %15, %15 : vector<16x32xf32>
    %cst_12 = arith.constant dense<0.000000e+00> : vector<16xf32>
    %17 = vector.multi_reduction <add>, %16, %cst_12 [1] : vector<16x32xf32> to vector<16xf32>
    %18 = vector.shape_cast %17 : vector<16xf32> to vector<16x1xf32>
    %cst_13 = arith.constant 3.200000e+01 : f32
    %19 = vector.broadcast %cst_13 : f32 to vector<16x1xf32>
    %20 = arith.divf %18, %19 : vector<16x1xf32>
    %cst_14 = arith.constant 9.99999974E-6 : f32
    %21 = vector.broadcast %cst_14 : f32 to vector<16x1xf32>
    %22 = arith.addf %20, %21 : vector<16x1xf32>
    %23 = math.rsqrt %22 : vector<16x1xf32>
    %24 = vector.broadcast %23 : vector<16x1xf32> to vector<16x32xf32>
    %25 = arith.mulf %15, %24 : vector<16x32xf32>
    %c0_15 = arith.constant 0 : index
    %c0_16 = arith.constant 0 : index
    %c0_17 = arith.constant 0 : index
    %26 = vector.load %arg4[%c0_15, %c0_16, %c0_17] : memref<3x1x32xf32, #tpu.memory_space<vmem>>, vector<1x1x32xf32>
    %27 = vector.shape_cast %26 : vector<1x1x32xf32> to vector<1x32xf32>
    %28 = vector.broadcast %27 : vector<1x32xf32> to vector<16x32xf32>
    %29 = arith.mulf %25, %28 : vector<16x32xf32>
    %c0_18 = arith.constant 0 : index
    %c0_19 = arith.constant 0 : index
    %c0_20 = arith.constant 0 : index
    %30 = vector.load %arg5[%c0_18, %c0_19, %c0_20] : memref<3x1x32xf32, #tpu.memory_space<vmem>>, vector<1x1x32xf32>
    %31 = vector.shape_cast %30 : vector<1x1x32xf32> to vector<1x32xf32>
    %32 = vector.broadcast %31 : vector<1x32xf32> to vector<16x32xf32>
    %33 = arith.addf %29, %32 : vector<16x32xf32>
    %cst_21 = arith.constant 5.000000e-01 : f32
    %34 = vector.broadcast %cst_21 : f32 to vector<16x32xf32>
    %35 = arith.mulf %34, %33 : vector<16x32xf32>
    %cst_22 = arith.constant 0.707106769 : f32
    %36 = vector.broadcast %cst_22 : f32 to vector<16x32xf32>
    %37 = arith.mulf %33, %36 : vector<16x32xf32>
    %38 = math.erf %37 : vector<16x32xf32>
    %cst_23 = arith.constant 1.000000e+00 : f32
    %39 = vector.broadcast %cst_23 : f32 to vector<16x32xf32>
    %40 = arith.addf %39, %38 : vector<16x32xf32>
    %41 = arith.mulf %35, %40 : vector<16x32xf32>
    %c0_24 = arith.constant 0 : index
    %c0_25 = arith.constant 0 : index
    %c0_26 = arith.constant 0 : index
    %42 = vector.load %arg6[%c0_24, %c0_25, %c0_26] : memref<3x16x32xf32, #tpu.memory_space<vmem>>, vector<1x16x32xf32>
    %43 = vector.shape_cast %42 : vector<1x16x32xf32> to vector<16x32xf32>
    %cst_27 = arith.constant 1.000000e-01 : f32
    %44 = vector.broadcast %cst_27 : f32 to vector<16x32xf32>
    %45 = arith.cmpf oge, %43, %44 : vector<16x32xf32>
    %cst_28 = arith.constant 1.11111116 : f32
    %46 = vector.broadcast %cst_28 : f32 to vector<16x32xf32>
    %47 = arith.mulf %41, %46 : vector<16x32xf32>
    %cst_29 = arith.constant 0.000000e+00 : f32
    %48 = vector.broadcast %cst_29 : f32 to vector<16x32xf32>
    %49 = arith.select %45, %47, %48 : vector<16x32xi1>, vector<16x32xf32>
    %c1 = arith.constant 1 : index
    %c0_30 = arith.constant 0 : index
    %c0_31 = arith.constant 0 : index
    %50 = vector.load %arg2[%c1, %c0_30, %c0_31] : memref<3x32x32xf32, #tpu.memory_space<vmem>>, vector<1x32x32xf32>
    %51 = vector.shape_cast %50 : vector<1x32x32xf32> to vector<32x32xf32>
    %cst_32 = arith.constant dense<0.000000e+00> : vector<16x32xf32>
    %52 = tpu.matmul %49, %51, %cst_32 {dimension_numbers = #tpu.dot_dimension_numbers<[1], [0], [0], [1], [0, 0, 1, 1], [], []>} : vector<16x32xf32>, vector<32x32xf32>, vector<16x32xf32> -> vector<16x32xf32>
    %cst_33 = arith.constant dense<0.000000e+00> : vector<16x32xf32>
    %53 = tpu.matmul %0, %52, %cst_33 {dimension_numbers = #tpu.dot_dimension_numbers<[1], [0], [0], [1], [0, 0, 1, 1], [], []>} : vector<16x16xf32>, vector<16x32xf32>, vector<16x32xf32> -> vector<16x32xf32>
    %c1_34 = arith.constant 1 : index
    %c0_35 = arith.constant 0 : index
    %c0_36 = arith.constant 0 : index
    %54 = vector.load %arg3[%c1_34, %c0_35, %c0_36] : memref<3x1x32xf32, #tpu.memory_space<vmem>>, vector<1x1x32xf32>
    %55 = vector.shape_cast %54 : vector<1x1x32xf32> to vector<1x32xf32>
    %56 = vector.broadcast %55 : vector<1x32xf32> to vector<16x32xf32>
    %57 = arith.addf %53, %56 : vector<16x32xf32>
    %cst_37 = arith.constant dense<0.000000e+00> : vector<16xf32>
    %58 = vector.multi_reduction <add>, %57, %cst_37 [1] : vector<16x32xf32> to vector<16xf32>
    %59 = vector.shape_cast %58 : vector<16xf32> to vector<16x1xf32>
    %cst_38 = arith.constant 3.200000e+01 : f32
    %60 = vector.broadcast %cst_38 : f32 to vector<16x1xf32>
    %61 = arith.divf %59, %60 : vector<16x1xf32>
    %62 = vector.broadcast %61 : vector<16x1xf32> to vector<16x32xf32>
    %63 = arith.subf %57, %62 : vector<16x32xf32>
    %64 = arith.mulf %63, %63 : vector<16x32xf32>
    %cst_39 = arith.constant dense<0.000000e+00> : vector<16xf32>
    %65 = vector.multi_reduction <add>, %64, %cst_39 [1] : vector<16x32xf32> to vector<16xf32>
    %66 = vector.shape_cast %65 : vector<16xf32> to vector<16x1xf32>
    %cst_40 = arith.constant 3.200000e+01 : f32
    %67 = vector.broadcast %cst_40 : f32 to vector<16x1xf32>
    %68 = arith.divf %66, %67 : vector<16x1xf32>
    %cst_41 = arith.constant 9.99999974E-6 : f32
    %69 = vector.broadcast %cst_41 : f32 to vector<16x1xf32>
    %70 = arith.addf %68, %69 : vector<16x1xf32>
    %71 = math.rsqrt %70 : vector<16x1xf32>
    %72 = vector.broadcast %71 : vector<16x1xf32> to vector<16x32xf32>
    %73 = arith.mulf %63, %72 : vector<16x32xf32>
    %c1_42 = arith.constant 1 : index
    %c0_43 = arith.constant 0 : index
    %c0_44 = arith.constant 0 : index
    %74 = vector.load %arg4[%c1_42, %c0_43, %c0_44] : memref<3x1x32xf32, #tpu.memory_space<vmem>>, vector<1x1x32xf32>
    %75 = vector.shape_cast %74 : vector<1x1x32xf32> to vector<1x32xf32>
    %76 = vector.broadcast %75 : vector<1x32xf32> to vector<16x32xf32>
    %77 = arith.mulf %73, %76 : vector<16x32xf32>
    %c1_45 = arith.constant 1 : index
    %c0_46 = arith.constant 0 : index
    %c0_47 = arith.constant 0 : index
    %78 = vector.load %arg5[%c1_45, %c0_46, %c0_47] : memref<3x1x32xf32, #tpu.memory_space<vmem>>, vector<1x1x32xf32>
    %79 = vector.shape_cast %78 : vector<1x1x32xf32> to vector<1x32xf32>
    %80 = vector.broadcast %79 : vector<1x32xf32> to vector<16x32xf32>
    %81 = arith.addf %77, %80 : vector<16x32xf32>
    %cst_48 = arith.constant 5.000000e-01 : f32
    %82 = vector.broadcast %cst_48 : f32 to vector<16x32xf32>
    %83 = arith.mulf %82, %81 : vector<16x32xf32>
    %cst_49 = arith.constant 0.707106769 : f32
    %84 = vector.broadcast %cst_49 : f32 to vector<16x32xf32>
    %85 = arith.mulf %81, %84 : vector<16x32xf32>
    %86 = math.erf %85 : vector<16x32xf32>
    %cst_50 = arith.constant 1.000000e+00 : f32
    %87 = vector.broadcast %cst_50 : f32 to vector<16x32xf32>
    %88 = arith.addf %87, %86 : vector<16x32xf32>
    %89 = arith.mulf %83, %88 : vector<16x32xf32>
    %c1_51 = arith.constant 1 : index
    %c0_52 = arith.constant 0 : index
    %c0_53 = arith.constant 0 : index
    %90 = vector.load %arg6[%c1_51, %c0_52, %c0_53] : memref<3x16x32xf32, #tpu.memory_space<vmem>>, vector<1x16x32xf32>
    %91 = vector.shape_cast %90 : vector<1x16x32xf32> to vector<16x32xf32>
    %cst_54 = arith.constant 1.000000e-01 : f32
    %92 = vector.broadcast %cst_54 : f32 to vector<16x32xf32>
    %93 = arith.cmpf oge, %91, %92 : vector<16x32xf32>
    %cst_55 = arith.constant 1.11111116 : f32
    %94 = vector.broadcast %cst_55 : f32 to vector<16x32xf32>
    %95 = arith.mulf %89, %94 : vector<16x32xf32>
    %cst_56 = arith.constant 0.000000e+00 : f32
    %96 = vector.broadcast %cst_56 : f32 to vector<16x32xf32>
    %97 = arith.select %93, %95, %96 : vector<16x32xi1>, vector<16x32xf32>
    %c2 = arith.constant 2 : index
    %c0_57 = arith.constant 0 : index
    %c0_58 = arith.constant 0 : index
    %98 = vector.load %arg2[%c2, %c0_57, %c0_58] : memref<3x32x32xf32, #tpu.memory_space<vmem>>, vector<1x32x32xf32>
    %99 = vector.shape_cast %98 : vector<1x32x32xf32> to vector<32x32xf32>
    %cst_59 = arith.constant dense<0.000000e+00> : vector<16x32xf32>
    %100 = tpu.matmul %97, %99, %cst_59 {dimension_numbers = #tpu.dot_dimension_numbers<[1], [0], [0], [1], [0, 0, 1, 1], [], []>} : vector<16x32xf32>, vector<32x32xf32>, vector<16x32xf32> -> vector<16x32xf32>
    %cst_60 = arith.constant dense<0.000000e+00> : vector<16x32xf32>
    %101 = tpu.matmul %0, %100, %cst_60 {dimension_numbers = #tpu.dot_dimension_numbers<[1], [0], [0], [1], [0, 0, 1, 1], [], []>} : vector<16x16xf32>, vector<16x32xf32>, vector<16x32xf32> -> vector<16x32xf32>
    %c2_61 = arith.constant 2 : index
    %c0_62 = arith.constant 0 : index
    %c0_63 = arith.constant 0 : index
    %102 = vector.load %arg3[%c2_61, %c0_62, %c0_63] : memref<3x1x32xf32, #tpu.memory_space<vmem>>, vector<1x1x32xf32>
    %103 = vector.shape_cast %102 : vector<1x1x32xf32> to vector<1x32xf32>
    %104 = vector.broadcast %103 : vector<1x32xf32> to vector<16x32xf32>
    %105 = arith.addf %101, %104 : vector<16x32xf32>
    %cst_64 = arith.constant dense<0.000000e+00> : vector<16xf32>
    %106 = vector.multi_reduction <add>, %105, %cst_64 [1] : vector<16x32xf32> to vector<16xf32>
    %107 = vector.shape_cast %106 : vector<16xf32> to vector<16x1xf32>
    %cst_65 = arith.constant 3.200000e+01 : f32
    %108 = vector.broadcast %cst_65 : f32 to vector<16x1xf32>
    %109 = arith.divf %107, %108 : vector<16x1xf32>
    %110 = vector.broadcast %109 : vector<16x1xf32> to vector<16x32xf32>
    %111 = arith.subf %105, %110 : vector<16x32xf32>
    %112 = arith.mulf %111, %111 : vector<16x32xf32>
    %cst_66 = arith.constant dense<0.000000e+00> : vector<16xf32>
    %113 = vector.multi_reduction <add>, %112, %cst_66 [1] : vector<16x32xf32> to vector<16xf32>
    %114 = vector.shape_cast %113 : vector<16xf32> to vector<16x1xf32>
    %cst_67 = arith.constant 3.200000e+01 : f32
    %115 = vector.broadcast %cst_67 : f32 to vector<16x1xf32>
    %116 = arith.divf %114, %115 : vector<16x1xf32>
    %cst_68 = arith.constant 9.99999974E-6 : f32
    %117 = vector.broadcast %cst_68 : f32 to vector<16x1xf32>
    %118 = arith.addf %116, %117 : vector<16x1xf32>
    %119 = math.rsqrt %118 : vector<16x1xf32>
    %120 = vector.broadcast %119 : vector<16x1xf32> to vector<16x32xf32>
    %121 = arith.mulf %111, %120 : vector<16x32xf32>
    %c2_69 = arith.constant 2 : index
    %c0_70 = arith.constant 0 : index
    %c0_71 = arith.constant 0 : index
    %122 = vector.load %arg4[%c2_69, %c0_70, %c0_71] : memref<3x1x32xf32, #tpu.memory_space<vmem>>, vector<1x1x32xf32>
    %123 = vector.shape_cast %122 : vector<1x1x32xf32> to vector<1x32xf32>
    %124 = vector.broadcast %123 : vector<1x32xf32> to vector<16x32xf32>
    %125 = arith.mulf %121, %124 : vector<16x32xf32>
    %c2_72 = arith.constant 2 : index
    %c0_73 = arith.constant 0 : index
    %c0_74 = arith.constant 0 : index
    %126 = vector.load %arg5[%c2_72, %c0_73, %c0_74] : memref<3x1x32xf32, #tpu.memory_space<vmem>>, vector<1x1x32xf32>
    %127 = vector.shape_cast %126 : vector<1x1x32xf32> to vector<1x32xf32>
    %128 = vector.broadcast %127 : vector<1x32xf32> to vector<16x32xf32>
    %129 = arith.addf %125, %128 : vector<16x32xf32>
    %cst_75 = arith.constant 5.000000e-01 : f32
    %130 = vector.broadcast %cst_75 : f32 to vector<16x32xf32>
    %131 = arith.mulf %130, %129 : vector<16x32xf32>
    %cst_76 = arith.constant 0.707106769 : f32
    %132 = vector.broadcast %cst_76 : f32 to vector<16x32xf32>
    %133 = arith.mulf %129, %132 : vector<16x32xf32>
    %134 = math.erf %133 : vector<16x32xf32>
    %cst_77 = arith.constant 1.000000e+00 : f32
    %135 = vector.broadcast %cst_77 : f32 to vector<16x32xf32>
    %136 = arith.addf %135, %134 : vector<16x32xf32>
    %137 = arith.mulf %131, %136 : vector<16x32xf32>
    %c2_78 = arith.constant 2 : index
    %c0_79 = arith.constant 0 : index
    %c0_80 = arith.constant 0 : index
    %138 = vector.load %arg6[%c2_78, %c0_79, %c0_80] : memref<3x16x32xf32, #tpu.memory_space<vmem>>, vector<1x16x32xf32>
    %139 = vector.shape_cast %138 : vector<1x16x32xf32> to vector<16x32xf32>
    %cst_81 = arith.constant 1.000000e-01 : f32
    %140 = vector.broadcast %cst_81 : f32 to vector<16x32xf32>
    %141 = arith.cmpf oge, %139, %140 : vector<16x32xf32>
    %cst_82 = arith.constant 1.11111116 : f32
    %142 = vector.broadcast %cst_82 : f32 to vector<16x32xf32>
    %143 = arith.mulf %137, %142 : vector<16x32xf32>
    %cst_83 = arith.constant 0.000000e+00 : f32
    %144 = vector.broadcast %cst_83 : f32 to vector<16x32xf32>
    %145 = arith.select %141, %143, %144 : vector<16x32xi1>, vector<16x32xf32>
    %c0_84 = arith.constant 0 : index
    %c0_85 = arith.constant 0 : index
    %146 = vector.load %arg7[%c0_84, %c0_85] : memref<16x32xf32, #tpu.memory_space<vmem>>, vector<16x32xf32>
    tpu.vector_store %arg7[%c0_84, %c0_85], %145 {strides = array<i32>} : memref<16x32xf32, #tpu.memory_space<vmem>>, vector<16x32xf32>,
    return
  }
}

</mosaic_0001>

<llo_original>
// kernel: tpu_custom_call.1
$region0: #{tpu_custom_call.1}
  #allocation0 [shape = 'u32[]', space=smem, size = 0x4, offset = 0x4, fixed_abs, tag = 'smem constant byte address 0x4 - core index']
  #allocation1 [shape = 'u32[144,128]{1,0:T(1,128)}', space=vmem, size = 0x12000, scoped, tag = 'internal scratch']
  %s0 = inlined_call_operand.hbm [shape: f32[16,16], index: 0, kind: input, shape index: {}]
  %s1 = inlined_call_operand.hbm [shape: f32[16,32], index: 1, kind: input, shape index: {}]
  %s2 = inlined_call_operand.hbm [shape: f32[3,32,32], index: 2, kind: input, shape index: {}]
  %s3 = inlined_call_operand.vmem [shape: f32[3,1,32], index: 3, kind: input, shape index: {}]
  %s4 = inlined_call_operand.vmem [shape: f32[3,1,32], index: 4, kind: input, shape index: {}]
  %s5 = inlined_call_operand.vmem [shape: f32[3,1,32], index: 5, kind: input, shape index: {}]
  %s6 = inlined_call_operand.hbm [shape: f32[3,16,32], index: 6, kind: input, shape index: {}]
  %s7 = inlined_call_operand.hbm [shape: f32[16,32], index: 7, kind: output, shape index: {}]
  %s8 = sld [smem:[#allocation0]]
  $region54: #{tpu_custom_call.1} parent=0
    _
  %s10 = ssub.s32 1, %s8
  %s11 = scalar_select 0, %s10, %s8
  $region1: #{tpu_custom_call.1} parent=0
    #allocation2 [shape = 'u8[8192]{0}', space=vmem, size = 0x2000, scoped, tag = 'input window, operand 0, single buffered']
    #allocation3 [shape = 's32[1]{0}', space=sflag, size = 0x4, scoped, tag = 'scoped memory for tpu_custom_call.1']
    #allocation4 [shape = 's32[1]{0}', space=sflag, size = 0x4, scoped, tag = 'scoped memory for tpu_custom_call.1']
    #allocation5 [shape = 'u8[8192]{0}', space=vmem, size = 0x2000, scoped, tag = 'input window, operand 1, single buffered']
    #allocation6 [shape = 's32[1]{0}', space=sflag, size = 0x4, scoped, tag = 'scoped memory for tpu_custom_call.1']
    #allocation7 [shape = 'u8[49152]{0}', space=vmem, size = 0xc000, scoped, tag = 'input window, operand 2, single buffered']
    #allocation8 [shape = 'u8[24576]{0}', space=vmem, size = 0x6000, scoped, tag = 'input window, operand 6, single buffered']
    #allocation9 [shape = 's32[1]{0}', space=sflag, size = 0x4, scoped, tag = 'scoped memory for tpu_custom_call.1']
    #allocation10 [shape = 'u8[8192]{0}', space=vmem, size = 0x2000, scoped, tag = 'output window, operand 0, single buffered']
    %12 = vsyncpa [#allocation3], 0
    %13 = vsyncpa [#allocation6], 0
    %14 = vsyncpa [#allocation9], 0
    %15 = vsyncpa [#allocation4], 0
    // Predicated region
    $region2: #{tpu_custom_call.1} parent=1 // pred_check
      _
    $region3: #{tpu_custom_call.1} parent=1 // pred_check_branch
      %17 = sbr.rel (0) target = $region5
    $region4: #{tpu_custom_call.1} parent=1 // pred_region
      %s19 = ssub.s32 256, 256
      %20 = vsyncadd [#allocation3], %s19
      %s21 = sshll.u32 [#allocation2], 4
      %s22 = int_to_ptr.vmem [resolvable:$true] %s21
      %27 = dma.hbm_to_vmem [thread:$0]  %s0, 256, %s22, [#allocation3], 128, 128, 8
    $region5: #{tpu_custom_call.1} parent=1 // pred_fallthru
      _
    // Predicated region
    $region6: #{tpu_custom_call.1} parent=1 // pred_check
      _
    $region7: #{tpu_custom_call.1} parent=1 // pred_check_branch
      %29 = sbr.rel (0) target = $region9
    $region8: #{tpu_custom_call.1} parent=1 // pred_region
      %s31 = ssub.s32 256, 256
      %32 = vsyncadd [#allocation6], %s31
      %s33 = sshll.u32 [#allocation5], 4
      %s34 = int_to_ptr.vmem [resolvable:$true] %s33
      %39 = dma.hbm_to_vmem [thread:$0]  %s1, 256, %s34, [#allocation6], 128, 128, 8
    $region9: #{tpu_custom_call.1} parent=1 // pred_fallthru
      _
    // Predicated region
    $region10: #{tpu_custom_call.1} parent=1 // pred_check
      _
    $region11: #{tpu_custom_call.1} parent=1 // pred_check_branch
      %41 = sbr.rel (0) target = $region13
    $region12: #{tpu_custom_call.1} parent=1 // pred_region
      %s43 = ssub.s32 1536, 1536
      %44 = vsyncadd [#allocation6], %s43
      %s45 = sshll.u32 [#allocation7], 4
      %s46 = int_to_ptr.vmem [resolvable:$true] %s45
      %51 = dma.hbm_to_vmem [thread:$0]  %s2, 1536, %s46, [#allocation6], 128, 128, 8
    $region13: #{tpu_custom_call.1} parent=1 // pred_fallthru
      _
    // Predicated region
    $region14: #{tpu_custom_call.1} parent=1 // pred_check
      _
    $region15: #{tpu_custom_call.1} parent=1 // pred_check_branch
      %53 = sbr.rel (0) target = $region17
    $region16: #{tpu_custom_call.1} parent=1 // pred_region
      _
    $region17: #{tpu_custom_call.1} parent=1 // pred_fallthru
      _
    // Predicated region
    $region18: #{tpu_custom_call.1} parent=1 // pred_check
      _
    $region19: #{tpu_custom_call.1} parent=1 // pred_check_branch
      %55 = sbr.rel (0) target = $region21
    $region20: #{tpu_custom_call.1} parent=1 // pred_region
      _
    $region21: #{tpu_custom_call.1} parent=1 // pred_fallthru
      _
    // Predicated region
    $region22: #{tpu_custom_call.1} parent=1 // pred_check
      _
    $region23: #{tpu_custom_call.1} parent=1 // pred_check_branch
      %57 = sbr.rel (0) target = $region25
    $region24: #{tpu_custom_call.1} parent=1 // pred_region
      _
    $region25: #{tpu_custom_call.1} parent=1 // pred_fallthru
      _
    // Predicated region
    $region26: #{tpu_custom_call.1} parent=1 // pred_check
      _
    $region27: #{tpu_custom_call.1} parent=1 // pred_check_branch
      %59 = sbr.rel (0) target = $region29
    $region28: #{tpu_custom_call.1} parent=1 // pred_region
      %s61 = ssub.s32 768, 768
      %62 = vsyncadd [#allocation9], %s61
      %s63 = sshll.u32 [#allocation8], 4
      %s64 = int_to_ptr.vmem [resolvable:$true] %s63
      %69 = dma.hbm_to_vmem [thread:$0]  %s6, 768, %s64, [#allocation9], 128, 128, 8
    $region29: #{tpu_custom_call.1} parent=1 // pred_fallthru
      _
    // Predicated region
    $region30: #{tpu_custom_call.1} parent=1 // pred_check
      _
    $region31: #{tpu_custom_call.1} parent=1 // pred_check_branch
      %71 = sbr.rel (0) target = $region33
    $region32: #{tpu_custom_call.1} parent=1 // pred_region
      %72 = dma.done [#allocation3], 256
    $region33: #{tpu_custom_call.1} parent=1 // pred_fallthru
      _
    // Predicated region
    $region34: #{tpu_custom_call.1} parent=1 // pred_check
      _
    $region35: #{tpu_custom_call.1} parent=1 // pred_check_branch
      %74 = sbr.rel (0) target = $region37
    $region36: #{tpu_custom_call.1} parent=1 // pred_region
      %75 = dma.done [#allocation6], 256
    $region37: #{tpu_custom_call.1} parent=1 // pred_fallthru
      _
    // Predicated region
    $region38: #{tpu_custom_call.1} parent=1 // pred_check
      _
    $region39: #{tpu_custom_call.1} parent=1 // pred_check_branch
      %77 = sbr.rel (0) target = $region41
    $region40: #{tpu_custom_call.1} parent=1 // pred_region
      %78 = dma.done [#allocation6], 1536
    $region41: #{tpu_custom_call.1} parent=1 // pred_fallthru
      _
    // Predicated region
    $region42: #{tpu_custom_call.1} parent=1 // pred_check
      _
    $region43: #{tpu_custom_call.1} parent=1 // pred_check_branch
      %80 = sbr.rel (0) target = $region45
    $region44: #{tpu_custom_call.1} parent=1 // pred_region
      %81 = dma.done [#allocation9], 768
    $region45: #{tpu_custom_call.1} parent=1 // pred_fallthru
      _
    %v82 = vld [vmem:[#allocation2] sm:$0xff]
    %v83 = vld [vmem:[#allocation2 + $0x8] sm:$0xff]
    %v84 = vld [vmem:[#allocation5] sm:$0xff]
    %v85 = vld [vmem:[#allocation5 + $0x8] sm:$0xff]
    %v86 = vld [vmem:[#allocation7] sm:$0xff]
    %v87 = vld [vmem:[#allocation7 + $0x8] sm:$0xff]
    %v88 = vld [vmem:[#allocation7 + $0x10] sm:$0xff]
    %v89 = vld [vmem:[#allocation7 + $0x18] sm:$0xff]
    %vm90 = vcmask 261120
    %v92 = vsel %vm90, %v84, 0
    %v95 = vsel %vm90, %v85, 0
    %97 = vmatprep.subr.mxu0 0.0
    %98 = vmatpush1.msra.mxu0 0.0
    %99 = vmatprep.subr.mxu0 0.0
    %100 = vmatpush1.msra.mxu0 0.0
    %101 = vmatprep.subr.mxu0 0.0
    %102 = vmatpush1.msra.mxu0 0.0
    %103 = vmatprep.subr.mxu0 0.0
    %104 = vmatpush1.msra.mxu0 0.0
    %105 = vmatprep.subr.mxu0 0.0
    %106 = vmatpush1.msra.mxu0 0.0
    %107 = vmatprep.subr.mxu0 0.0
    %108 = vmatpush1.msra.mxu0 0.0
    %109 = vmatprep.subr.mxu0 0.0
    %110 = vmatpush1.msra.mxu0 0.0
    %111 = vmatprep.subr.mxu0 0.0
    %112 = vmatpush1.msra.mxu0 0.0
    %113 = vmatprep.subr.mxu0 0.0
    %114 = vmatpush1.msra.mxu0 0.0
    %115 = vmatprep.subr.mxu0 0.0
    %116 = vmatpush1.msra.mxu0 0.0
    %117 = vmatprep.subr.mxu0 0.0
    %118 = vmatpush1.msra.mxu0 0.0
    %119 = vmatprep.subr.mxu0 0.0
    %120 = vmatpush1.msra.mxu0 0.0
    %121 = vmatprep.subr.mxu0 0.0
    %122 = vmatpush1.msra.mxu0 %v89
    %123 = vmatprep.subr.mxu0 0.0
    %124 = vmatpush1.msra.mxu0 %v88
    %125 = vmatprep.subr.mxu0 0.0
    %126 = vmatpush1.msra.mxu0 %v87
    %127 = vmatprep.subr.mxu0 0.0
    %128 = vmatpush1.msra.mxu0 %v86
    %129 = vmatprep.subr.mxu0 0.0
    %130 = vmatpush2.msra.mxu0 0.0
    %131 = vmatprep.subr.mxu0 0.0
    %132 = vmatpush2.msra.mxu0 0.0
    %133 = vmatprep.subr.mxu0 0.0
    %134 = vmatpush2.msra.mxu0 0.0
    %135 = vmatprep.subr.mxu0 0.0
    %136 = vmatpush2.msra.mxu0 0.0
    %137 = vmatprep.subr.mxu0 0.0
    %138 = vmatpush2.msra.mxu0 0.0
    %139 = vmatprep.subr.mxu0 0.0
    %140 = vmatpush2.msra.mxu0 0.0
    %141 = vmatprep.subr.mxu0 0.0
    %142 = vmatpush2.msra.mxu0 0.0
    %143 = vmatprep.subr.mxu0 0.0
    %144 = vmatpush2.msra.mxu0 0.0
    %145 = vmatprep.subr.mxu0 0.0
    %146 = vmatpush2.msra.mxu0 0.0
    %147 = vmatprep.subr.mxu0 0.0
    %148 = vmatpush2.msra.mxu0 0.0
    %149 = vmatprep.subr.mxu0 0.0
    %150 = vmatpush2.msra.mxu0 0.0
    %151 = vmatprep.subr.mxu0 0.0
    %152 = vmatpush2.msra.mxu0 0.0
    %153 = vmatprep.subr.mxu0 0.0
    %154 = vmatpush2.msra.mxu0 0.0
    %155 = vmatprep.subr.mxu0 0.0
    %156 = vmatpush2.msra.mxu0 0.0
    %157 = vmatprep.subr.mxu0 0.0
    %158 = vmatpush2.msra.mxu0 0.0
    %159 = vmatprep.subr.mxu0 0.0
    %160 = vmatpush2.msra.mxu0 0.0
    %161 = vmatprep.mubr.f32.mxu0 0.0
    %162 = vmatmul.mubr.f32.gmra.mxu0 %v92
    %v163 = vpop.f32.mrf.mxu0
    %v164 = vadd.f32 0.0, %v163
    %v165 = vpop.f32.mrf.mxu0
    %166 = vmatprep.mubr.f32.mxu0 0.0
    %167 = vmatmul.mubr.f32.gmra.mxu0 %v95
    %v168 = vpop.f32.mrf.mxu0
    %v169 = vadd.f32 0.0, %v168
    %v170 = vpop.f32.mrf.mxu0
    %171 = vdwg.mxu0
    %v172 = vld [vmem:[%s3] sm:$0x1]
    %v174 = vlaneseq
    %v175 = vshrl.u32 %v174, 7
    %v176 = vsub.s32 0, %v175
    %v177 = vrot.slane %v172, %v176
    %vm179 = vcmask 130048
    %v181 = vsel %vm179, %v82, 0
    %v184 = vsel %vm179, %v83, 0
    %186 = vmatprep.subr.mxu0 0.0
    %187 = vmatpush1.msra.mxu0 0.0
    %188 = vmatprep.subr.mxu0 0.0
    %189 = vmatpush1.msra.mxu0 0.0
    %190 = vmatprep.subr.mxu0 0.0
    %191 = vmatpush1.msra.mxu0 0.0
    %192 = vmatprep.subr.mxu0 0.0
    %193 = vmatpush1.msra.mxu0 0.0
    %194 = vmatprep.subr.mxu0 0.0
    %195 = vmatpush1.msra.mxu0 0.0
    %196 = vmatprep.subr.mxu0 0.0
    %197 = vmatpush1.msra.mxu0 0.0
    %198 = vmatprep.subr.mxu0 0.0
    %199 = vmatpush1.msra.mxu0 0.0
    %200 = vmatprep.subr.mxu0 0.0
    %201 = vmatpush1.msra.mxu0 0.0
    %202 = vmatprep.subr.mxu0 0.0
    %203 = vmatpush1.msra.mxu0 0.0
    %204 = vmatprep.subr.mxu0 0.0
    %205 = vmatpush1.msra.mxu0 0.0
    %206 = vmatprep.subr.mxu0 0.0
    %207 = vmatpush1.msra.mxu0 0.0
    %208 = vmatprep.subr.mxu0 0.0
    %209 = vmatpush1.msra.mxu0 0.0
    %210 = vmatprep.subr.mxu0 0.0
    %211 = vmatpush1.msra.mxu0 0.0
    %212 = vmatprep.subr.mxu0 0.0
    %213 = vmatpush1.msra.mxu0 0.0
    %214 = vmatprep.subr.mxu0 0.0
    %215 = vmatpush1.msra.mxu0 %v169
    %216 = vmatprep.subr.mxu0 0.0
    %217 = vmatpush1.msra.mxu0 %v164
    %218 = vmatprep.subr.mxu0 0.0
    %219 = vmatpush2.msra.mxu0 0.0
    %220 = vmatprep.subr.mxu0 0.0
    %221 = vmatpush2.msra.mxu0 0.0
    %222 = vmatprep.subr.mxu0 0.0
    %223 = vmatpush2.msra.mxu0 0.0
    %224 = vmatprep.subr.mxu0 0.0
    %225 = vmatpush2.msra.mxu0 0.0
    %226 = vmatprep.subr.mxu0 0.0
    %227 = vmatpush2.msra.mxu0 0.0
    %228 = vmatprep.subr.mxu0 0.0
    %229 = vmatpush2.msra.mxu0 0.0
    %230 = vmatprep.subr.mxu0 0.0
    %231 = vmatpush2.msra.mxu0 0.0
    %232 = vmatprep.subr.mxu0 0.0
    %233 = vmatpush2.msra.mxu0 0.0
    %234 = vmatprep.subr.mxu0 0.0
    %235 = vmatpush2.msra.mxu0 0.0
    %236 = vmatprep.subr.mxu0 0.0
    %237 = vmatpush2.msra.mxu0 0.0
    %238 = vmatprep.subr.mxu0 0.0
    %239 = vmatpush2.msra.mxu0 0.0
    %240 = vmatprep.subr.mxu0 0.0
    %241 = vmatpush2.msra.mxu0 0.0
    %242 = vmatprep.subr.mxu0 0.0
    %243 = vmatpush2.msra.mxu0 0.0
    %244 = vmatprep.subr.mxu0 0.0
    %245 = vmatpush2.msra.mxu0 0.0
    %246 = vmatprep.subr.mxu0 0.0
    %247 = vmatpush2.msra.mxu0 0.0
    %248 = vmatprep.subr.mxu0 0.0
    %249 = vmatpush2.msra.mxu0 0.0
    %250 = vmatprep.mubr.f32.mxu0 0.0
    %251 = vmatmul.mubr.f32.gmra.mxu0 %v181
    %v252 = vpop.f32.mrf.mxu0
    %v253 = vadd.f32 %v177, %v252
    %v254 = vpop.f32.mrf.mxu0
    %255 = vmatprep.mubr.f32.mxu0 0.0
    %256 = vmatmul.mubr.f32.gmra.mxu0 %v184
    %v257 = vpop.f32.mrf.mxu0
    %v258 = vadd.f32 %v177, %v257
    %v259 = vpop.f32.mrf.mxu0
    %260 = vdwg.mxu0
    %v261 = vsel %vm90, %v253, 0.0
    %262 = vadd.xlane.f32.xlu0 %v261
    %v263 = vpop.xlane.xlu0 %262
    %v264 = vsel %vm90, %v258, 0.0
    %265 = vadd.xlane.f32.xlu0 %v264
    %v266 = vpop.xlane.xlu0 %265
    %v267 = vrcp.pop 32.0
    %v268 = vmul.f32 %v263, %v267
    %v269 = vmul.f32 %v266, %v267
    %v270 = vsub.f32 %v253, %v268
    %v271 = vsub.f32 %v258, %v269
    %v272 = vmul.f32 %v270, %v270
    %v273 = vmul.f32 %v271, %v271
    %v274 = vsel %vm90, %v272, 0.0
    %275 = vadd.xlane.f32.xlu0 %v274
    %v276 = vpop.xlane.xlu0 %275
    %v277 = vsel %vm90, %v273, 0.0
    %278 = vadd.xlane.f32.xlu0 %v277
    %v279 = vpop.xlane.xlu0 %278
    %v280 = vmul.f32 %v276, %v267
    %v281 = vmul.f32 %v279, %v267
    %v282 = vadd.f32 %v280, 1e-05
    %v283 = vadd.f32 %v281, 1e-05
    %v284 = vrsqrt.pop %v282
    %v285 = vrsqrt.pop %v283
    %v286 = vmul.f32 %v270, %v284
    %v287 = vmul.f32 %v271, %v285
    %v288 = vld [vmem:[%s4] sm:$0x1]
    %v290 = vlaneseq
    %v291 = vshrl.u32 %v290, 7
    %v292 = vsub.s32 0, %v291
    %v293 = vrot.slane %v288, %v292
    %v295 = vmul.f32 %v286, %v293
    %v296 = vmul.f32 %v287, %v293
    %v297 = vld [vmem:[%s5] sm:$0x1]
    %v299 = vlaneseq
    %v300 = vshrl.u32 %v299, 7
    %v301 = vsub.s32 0, %v300
    %v302 = vrot.slane %v297, %v301
    %v304 = vadd.f32 %v295, %v302
    %v305 = vadd.f32 %v296, %v302
    %v306 = vmul.f32 %v304, 0.5
    %v307 = vmul.f32 %v305, 0.5
    %v308 = vmul.f32 %v304, 0.70710677
    %v309 = vmul.f32 %v305, 0.70710677
    %v310 = verf.f32.pop %v308
    %v311 = verf.f32.pop %v309
    %v312 = vadd.f32 %v310, 1.0
    %v313 = vadd.f32 %v311, 1.0
    %v314 = vmul.f32 %v306, %v312
    %v315 = vmul.f32 %v307, %v313
    %v316 = vld [vmem:[#allocation8] sm:$0xff]
    %v317 = vld [vmem:[#allocation8 + $0x8] sm:$0xff]
    %vm318 = vcmp.ge.f32.partialorder %v316, 0.1
    %vm319 = vcmp.ge.f32.partialorder %v317, 0.1
    %v320 = vmul.f32 %v314, 1.1111112
    %v321 = vmul.f32 %v315, 1.1111112
    %v322 = vsel %vm318, %v320, 0.0
    %v323 = vsel %vm319, %v321, 0.0
    %s324 = scalar_lea.vmem [#allocation7], 32
    %v325 = vld [vmem:[%s324] sm:$0xff]
    %v326 = vld [vmem:[%s324 + $0x8] sm:$0xff]
    %v327 = vld [vmem:[%s324 + $0x10] sm:$0xff]
    %v328 = vld [vmem:[%s324 + $0x18] sm:$0xff]
    %v330 = vsel %vm90, %v322, 0
    %v333 = vsel %vm90, %v323, 0
    %335 = vmatprep.subr.mxu0 0.0
    %336 = vmatpush1.msra.mxu0 0.0
    %337 = vmatprep.subr.mxu0 0.0
    %338 = vmatpush1.msra.mxu0 0.0
    %339 = vmatprep.subr.mxu0 0.0
    %340 = vmatpush1.msra.mxu0 0.0
    %341 = vmatprep.subr.mxu0 0.0
    %342 = vmatpush1.msra.mxu0 0.0
    %343 = vmatprep.subr.mxu0 0.0
    %344 = vmatpush1.msra.mxu0 0.0
    %345 = vmatprep.subr.mxu0 0.0
    %346 = vmatpush1.msra.mxu0 0.0
    %347 = vmatprep.subr.mxu0 0.0
    %348 = vmatpush1.msra.mxu0 0.0
    %349 = vmatprep.subr.mxu0 0.0
    %350 = vmatpush1.msra.mxu0 0.0
    %351 = vmatprep.subr.mxu0 0.0
    %352 = vmatpush1.msra.mxu0 0.0
    %353 = vmatprep.subr.mxu0 0.0
    %354 = vmatpush1.msra.mxu0 0.0
    %355 = vmatprep.subr.mxu0 0.0
    %356 = vmatpush1.msra.mxu0 0.0
    %357 = vmatprep.subr.mxu0 0.0
    %358 = vmatpush1.msra.mxu0 0.0
    %359 = vmatprep.subr.mxu0 0.0
    %360 = vmatpush1.msra.mxu0 %v328
    %361 = vmatprep.subr.mxu0 0.0
    %362 = vmatpush1.msra.mxu0 %v327
    %363 = vmatprep.subr.mxu0 0.0
    %364 = vmatpush1.msra.mxu0 %v326
    %365 = vmatprep.subr.mxu0 0.0
    %366 = vmatpush1.msra.mxu0 %v325
    %367 = vmatprep.subr.mxu0 0.0
    %368 = vmatpush2.msra.mxu0 0.0
    %369 = vmatprep.subr.mxu0 0.0
    %370 = vmatpush2.msra.mxu0 0.0
    %371 = vmatprep.subr.mxu0 0.0
    %372 = vmatpush2.msra.mxu0 0.0
    %373 = vmatprep.subr.mxu0 0.0
    %374 = vmatpush2.msra.mxu0 0.0
    %375 = vmatprep.subr.mxu0 0.0
    %376 = vmatpush2.msra.mxu0 0.0
    %377 = vmatprep.subr.mxu0 0.0
    %378 = vmatpush2.msra.mxu0 0.0
    %379 = vmatprep.subr.mxu0 0.0
    %380 = vmatpush2.msra.mxu0 0.0
    %381 = vmatprep.subr.mxu0 0.0
    %382 = vmatpush2.msra.mxu0 0.0
    %383 = vmatprep.subr.mxu0 0.0
    %384 = vmatpush2.msra.mxu0 0.0
    %385 = vmatprep.subr.mxu0 0.0
    %386 = vmatpush2.msra.mxu0 0.0
    %387 = vmatprep.subr.mxu0 0.0
    %388 = vmatpush2.msra.mxu0 0.0
    %389 = vmatprep.subr.mxu0 0.0
    %390 = vmatpush2.msra.mxu0 0.0
    %391 = vmatprep.subr.mxu0 0.0
    %392 = vmatpush2.msra.mxu0 0.0
    %393 = vmatprep.subr.mxu0 0.0
    %394 = vmatpush2.msra.mxu0 0.0
    %395 = vmatprep.subr.mxu0 0.0
    %396 = vmatpush2.msra.mxu0 0.0
    %397 = vmatprep.subr.mxu0 0.0
    %398 = vmatpush2.msra.mxu0 0.0
    %399 = vmatprep.mubr.f32.mxu0 0.0
    %400 = vmatmul.mubr.f32.gmra.mxu0 %v330
    %v401 = vpop.f32.mrf.mxu0
    %v402 = vadd.f32 0.0, %v401
    %v403 = vpop.f32.mrf.mxu0
    %404 = vmatprep.mubr.f32.mxu0 0.0
    %405 = vmatmul.mubr.f32.gmra.mxu0 %v333
    %v406 = vpop.f32.mrf.mxu0
    %v407 = vadd.f32 0.0, %v406
    %v408 = vpop.f32.mrf.mxu0
    %409 = vdwg.mxu0
    %s410 = scalar_lea.vmem %s3, 1
    %v411 = vld [vmem:[%s410] sm:$0x1]
    %v413 = vlaneseq
    %v414 = vshrl.u32 %v413, 7
    %v415 = vsub.s32 0, %v414
    %v416 = vrot.slane %v411, %v415
    %418 = vmatprep.subr.mxu0 0.0
    %419 = vmatpush1.msra.mxu0 0.0
    %420 = vmatprep.subr.mxu0 0.0
    %421 = vmatpush1.msra.mxu0 0.0
    %422 = vmatprep.subr.mxu0 0.0
    %423 = vmatpush1.msra.mxu0 0.0
    %424 = vmatprep.subr.mxu0 0.0
    %425 = vmatpush1.msra.mxu0 0.0
    %426 = vmatprep.subr.mxu0 0.0
    %427 = vmatpush1.msra.mxu0 0.0
    %428 = vmatprep.subr.mxu0 0.0
    %429 = vmatpush1.msra.mxu0 0.0
    %430 = vmatprep.subr.mxu0 0.0
    %431 = vmatpush1.msra.mxu0 0.0
    %432 = vmatprep.subr.mxu0 0.0
    %433 = vmatpush1.msra.mxu0 0.0
    %434 = vmatprep.subr.mxu0 0.0
    %435 = vmatpush1.msra.mxu0 0.0
    %436 = vmatprep.subr.mxu0 0.0
    %437 = vmatpush1.msra.mxu0 0.0
    %438 = vmatprep.subr.mxu0 0.0
    %439 = vmatpush1.msra.mxu0 0.0
    %440 = vmatprep.subr.mxu0 0.0
    %441 = vmatpush1.msra.mxu0 0.0
    %442 = vmatprep.subr.mxu0 0.0
    %443 = vmatpush1.msra.mxu0 0.0
    %444 = vmatprep.subr.mxu0 0.0
    %445 = vmatpush1.msra.mxu0 0.0
    %446 = vmatprep.subr.mxu0 0.0
    %447 = vmatpush1.msra.mxu0 %v407
    %448 = vmatprep.subr.mxu0 0.0
    %449 = vmatpush1.msra.mxu0 %v402
    %450 = vmatprep.subr.mxu0 0.0
    %451 = vmatpush2.msra.mxu0 0.0
    %452 = vmatprep.subr.mxu0 0.0
    %453 = vmatpush2.msra.mxu0 0.0
    %454 = vmatprep.subr.mxu0 0.0
    %455 = vmatpush2.msra.mxu0 0.0
    %456 = vmatprep.subr.mxu0 0.0
    %457 = vmatpush2.msra.mxu0 0.0
    %458 = vmatprep.subr.mxu0 0.0
    %459 = vmatpush2.msra.mxu0 0.0
    %460 = vmatprep.subr.mxu0 0.0
    %461 = vmatpush2.msra.mxu0 0.0
    %462 = vmatprep.subr.mxu0 0.0
    %463 = vmatpush2.msra.mxu0 0.0
    %464 = vmatprep.subr.mxu0 0.0
    %465 = vmatpush2.msra.mxu0 0.0
    %466 = vmatprep.subr.mxu0 0.0
    %467 = vmatpush2.msra.mxu0 0.0
    %468 = vmatprep.subr.mxu0 0.0
    %469 = vmatpush2.msra.mxu0 0.0
    %470 = vmatprep.subr.mxu0 0.0
    %471 = vmatpush2.msra.mxu0 0.0
    %472 = vmatprep.subr.mxu0 0.0
    %473 = vmatpush2.msra.mxu0 0.0
    %474 = vmatprep.subr.mxu0 0.0
    %475 = vmatpush2.msra.mxu0 0.0
    %476 = vmatprep.subr.mxu0 0.0
    %477 = vmatpush2.msra.mxu0 0.0
    %478 = vmatprep.subr.mxu0 0.0
    %479 = vmatpush2.msra.mxu0 0.0
    %480 = vmatprep.subr.mxu0 0.0
    %481 = vmatpush2.msra.mxu0 0.0
    %482 = vmatprep.mubr.f32.mxu0 0.0
    %483 = vmatmul.mubr.f32.gmra.mxu0 %v181
    %v484 = vpop.f32.mrf.mxu0
    %v485 = vadd.f32 %v416, %v484
    %v486 = vpop.f32.mrf.mxu0
    %487 = vmatprep.mubr.f32.mxu0 0.0
    %488 = vmatmul.mubr.f32.gmra.mxu0 %v184
    %v489 = vpop.f32.mrf.mxu0
    %v490 = vadd.f32 %v416, %v489
    %v491 = vpop.f32.mrf.mxu0
    %492 = vdwg.mxu0
    %v493 = vsel %vm90, %v485, 0.0
    %494 = vadd.xlane.f32.xlu0 %v493
    %v495 = vpop.xlane.xlu0 %494
    %v496 = vsel %vm90, %v490, 0.0
    %497 = vadd.xlane.f32.xlu0 %v496
    %v498 = vpop.xlane.xlu0 %497
    %v499 = vmul.f32 %v495, %v267
    %v500 = vmul.f32 %v498, %v267
    %v501 = vsub.f32 %v485, %v499
    %v502 = vsub.f32 %v490, %v500
    %v503 = vmul.f32 %v501, %v501
    %v504 = vmul.f32 %v502, %v502
    %v505 = vsel %vm90, %v503, 0.0
    %506 = vadd.xlane.f32.xlu0 %v505
    %v507 = vpop.xlane.xlu0 %506
    %v508 = vsel %vm90, %v504, 0.0
    %509 = vadd.xlane.f32.xlu0 %v508
    %v510 = vpop.xlane.xlu0 %509
    %v511 = vmul.f32 %v507, %v267
    %v512 = vmul.f32 %v510, %v267
    %v513 = vadd.f32 %v511, 1e-05
    %v514 = vadd.f32 %v512, 1e-05
    %v515 = vrsqrt.pop %v513
    %v516 = vrsqrt.pop %v514
    %v517 = vmul.f32 %v501, %v515
    %v518 = vmul.f32 %v502, %v516
    %s519 = scalar_lea.vmem %s4, 1
    %v520 = vld [vmem:[%s519] sm:$0x1]
    %v522 = vlaneseq
    %v523 = vshrl.u32 %v522, 7
    %v524 = vsub.s32 0, %v523
    %v525 = vrot.slane %v520, %v524
    %v527 = vmul.f32 %v517, %v525
    %v528 = vmul.f32 %v518, %v525
    %s529 = scalar_lea.vmem %s5, 1
    %v530 = vld [vmem:[%s529] sm:$0x1]
    %v532 = vlaneseq
    %v533 = vshrl.u32 %v532, 7
    %v534 = vsub.s32 0, %v533
    %v535 = vrot.slane %v530, %v534
    %v537 = vadd.f32 %v527, %v535
    %v538 = vadd.f32 %v528, %v535
    %v539 = vmul.f32 %v537, 0.5
    %v540 = vmul.f32 %v538, 0.5
    %v541 = vmul.f32 %v537, 0.70710677
    %v542 = vmul.f32 %v538, 0.70710677
    %v543 = verf.f32.pop %v541
    %v544 = verf.f32.pop %v542
    %v545 = vadd.f32 %v543, 1.0
    %v546 = vadd.f32 %v544, 1.0
    %v547 = vmul.f32 %v539, %v545
    %v548 = vmul.f32 %v540, %v546
    %s549 = scalar_lea.vmem [#allocation8], 16
    %v550 = vld [vmem:[%s549] sm:$0xff]
    %v551 = vld [vmem:[%s549 + $0x8] sm:$0xff]
    %vm552 = vcmp.ge.f32.partialorder %v550, 0.1
    %vm553 = vcmp.ge.f32.partialorder %v551, 0.1
    %v554 = vmul.f32 %v547, 1.1111112
    %v555 = vmul.f32 %v548, 1.1111112
    %v556 = vsel %vm552, %v554, 0.0
    %v557 = vsel %vm553, %v555, 0.0
    %s558 = scalar_lea.vmem [#allocation7], 64
    %v559 = vld [vmem:[%s558] sm:$0xff]
    %v560 = vld [vmem:[%s558 + $0x8] sm:$0xff]
    %v561 = vld [vmem:[%s558 + $0x10] sm:$0xff]
    %v562 = vld [vmem:[%s558 + $0x18] sm:$0xff]
    %v564 = vsel %vm90, %v556, 0
    %v567 = vsel %vm90, %v557, 0
    %569 = vmatprep.subr.mxu0 0.0
    %570 = vmatpush1.msra.mxu0 0.0
    %571 = vmatprep.subr.mxu0 0.0
    %572 = vmatpush1.msra.mxu0 0.0
    %573 = vmatprep.subr.mxu0 0.0
    %574 = vmatpush1.msra.mxu0 0.0
    %575 = vmatprep.subr.mxu0 0.0
    %576 = vmatpush1.msra.mxu0 0.0
    %577 = vmatprep.subr.mxu0 0.0
    %578 = vmatpush1.msra.mxu0 0.0
    %579 = vmatprep.subr.mxu0 0.0
    %580 = vmatpush1.msra.mxu0 0.0
    %581 = vmatprep.subr.mxu0 0.0
    %582 = vmatpush1.msra.mxu0 0.0
    %583 = vmatprep.subr.mxu0 0.0
    %584 = vmatpush1.msra.mxu0 0.0
    %585 = vmatprep.subr.mxu0 0.0
    %586 = vmatpush1.msra.mxu0 0.0
    %587 = vmatprep.subr.mxu0 0.0
    %588 = vmatpush1.msra.mxu0 0.0
    %589 = vmatprep.subr.mxu0 0.0
    %590 = vmatpush1.msra.mxu0 0.0
    %591 = vmatprep.subr.mxu0 0.0
    %592 = vmatpush1.msra.mxu0 0.0
    %593 = vmatprep.subr.mxu0 0.0
    %594 = vmatpush1.msra.mxu0 %v562
    %595 = vmatprep.subr.mxu0 0.0
    %596 = vmatpush1.msra.mxu0 %v561
    %597 = vmatprep.subr.mxu0 0.0
    %598 = vmatpush1.msra.mxu0 %v560
    %599 = vmatprep.subr.mxu0 0.0
    %600 = vmatpush1.msra.mxu0 %v559
    %601 = vmatprep.subr.mxu0 0.0
    %602 = vmatpush2.msra.mxu0 0.0
    %603 = vmatprep.subr.mxu0 0.0
    %604 = vmatpush2.msra.mxu0 0.0
    %605 = vmatprep.subr.mxu0 0.0
    %606 = vmatpush2.msra.mxu0 0.0
    %607 = vmatprep.subr.mxu0 0.0
    %608 = vmatpush2.msra.mxu0 0.0
    %609 = vmatprep.subr.mxu0 0.0
    %610 = vmatpush2.msra.mxu0 0.0
    %611 = vmatprep.subr.mxu0 0.0
    %612 = vmatpush2.msra.mxu0 0.0
    %613 = vmatprep.subr.mxu0 0.0
    %614 = vmatpush2.msra.mxu0 0.0
    %615 = vmatprep.subr.mxu0 0.0
    %616 = vmatpush2.msra.mxu0 0.0
    %617 = vmatprep.subr.mxu0 0.0
    %618 = vmatpush2.msra.mxu0 0.0
    %619 = vmatprep.subr.mxu0 0.0
    %620 = vmatpush2.msra.mxu0 0.0
    %621 = vmatprep.subr.mxu0 0.0
    %622 = vmatpush2.msra.mxu0 0.0
    %623 = vmatprep.subr.mxu0 0.0
    %624 = vmatpush2.msra.mxu0 0.0
    %625 = vmatprep.subr.mxu0 0.0
    %626 = vmatpush2.msra.mxu0 0.0
    %627 = vmatprep.subr.mxu0 0.0
    %628 = vmatpush2.msra.mxu0 0.0
    %629 = vmatprep.subr.mxu0 0.0
    %630 = vmatpush2.msra.mxu0 0.0
    %631 = vmatprep.subr.mxu0 0.0
    %632 = vmatpush2.msra.mxu0 0.0
    %633 = vmatprep.mubr.f32.mxu0 0.0
    %634 = vmatmul.mubr.f32.gmra.mxu0 %v564
    %v635 = vpop.f32.mrf.mxu0
    %v636 = vadd.f32 0.0, %v635
    %v637 = vpop.f32.mrf.mxu0
    %638 = vmatprep.mubr.f32.mxu0 0.0
    %639 = vmatmul.mubr.f32.gmra.mxu0 %v567
    %v640 = vpop.f32.mrf.mxu0
    %v641 = vadd.f32 0.0, %v640
    %v642 = vpop.f32.mrf.mxu0
    %643 = vdwg.mxu0
    %s644 = scalar_lea.vmem %s3, 2
    %v645 = vld [vmem:[%s644] sm:$0x1]
    %v647 = vlaneseq
    %v648 = vshrl.u32 %v647, 7
    %v649 = vsub.s32 0, %v648
    %v650 = vrot.slane %v645, %v649
    %652 = vmatprep.subr.mxu0 0.0
    %653 = vmatpush1.msra.mxu0 0.0
    %654 = vmatprep.subr.mxu0 0.0
    %655 = vmatpush1.msra.mxu0 0.0
    %656 = vmatprep.subr.mxu0 0.0
    %657 = vmatpush1.msra.mxu0 0.0
    %658 = vmatprep.subr.mxu0 0.0
    %659 = vmatpush1.msra.mxu0 0.0
    %660 = vmatprep.subr.mxu0 0.0
    %661 = vmatpush1.msra.mxu0 0.0
    %662 = vmatprep.subr.mxu0 0.0
    %663 = vmatpush1.msra.mxu0 0.0
    %664 = vmatprep.subr.mxu0 0.0
    %665 = vmatpush1.msra.mxu0 0.0
    %666 = vmatprep.subr.mxu0 0.0
    %667 = vmatpush1.msra.mxu0 0.0
    %668 = vmatprep.subr.mxu0 0.0
    %669 = vmatpush1.msra.mxu0 0.0
    %670 = vmatprep.subr.mxu0 0.0
    %671 = vmatpush1.msra.mxu0 0.0
    %672 = vmatprep.subr.mxu0 0.0
    %673 = vmatpush1.msra.mxu0 0.0
    %674 = vmatprep.subr.mxu0 0.0
    %675 = vmatpush1.msra.mxu0 0.0
    %676 = vmatprep.subr.mxu0 0.0
    %677 = vmatpush1.msra.mxu0 0.0
    %678 = vmatprep.subr.mxu0 0.0
    %679 = vmatpush1.msra.mxu0 0.0
    %680 = vmatprep.subr.mxu0 0.0
    %681 = vmatpush1.msra.mxu0 %v641
    %682 = vmatprep.subr.mxu0 0.0
    %683 = vmatpush1.msra.mxu0 %v636
    %684 = vmatprep.subr.mxu0 0.0
    %685 = vmatpush2.msra.mxu0 0.0
    %686 = vmatprep.subr.mxu0 0.0
    %687 = vmatpush2.msra.mxu0 0.0
    %688 = vmatprep.subr.mxu0 0.0
    %689 = vmatpush2.msra.mxu0 0.0
    %690 = vmatprep.subr.mxu0 0.0
    %691 = vmatpush2.msra.mxu0 0.0
    %692 = vmatprep.subr.mxu0 0.0
    %693 = vmatpush2.msra.mxu0 0.0
    %694 = vmatprep.subr.mxu0 0.0
    %695 = vmatpush2.msra.mxu0 0.0
    %696 = vmatprep.subr.mxu0 0.0
    %697 = vmatpush2.msra.mxu0 0.0
    %698 = vmatprep.subr.mxu0 0.0
    %699 = vmatpush2.msra.mxu0 0.0
    %700 = vmatprep.subr.mxu0 0.0
    %701 = vmatpush2.msra.mxu0 0.0
    %702 = vmatprep.subr.mxu0 0.0
    %703 = vmatpush2.msra.mxu0 0.0
    %704 = vmatprep.subr.mxu0 0.0
    %705 = vmatpush2.msra.mxu0 0.0
    %706 = vmatprep.subr.mxu0 0.0
    %707 = vmatpush2.msra.mxu0 0.0
    %708 = vmatprep.subr.mxu0 0.0
    %709 = vmatpush2.msra.mxu0 0.0
    %710 = vmatprep.subr.mxu0 0.0
    %711 = vmatpush2.msra.mxu0 0.0
    %712 = vmatprep.subr.mxu0 0.0
    %713 = vmatpush2.msra.mxu0 0.0
    %714 = vmatprep.subr.mxu0 0.0
    %715 = vmatpush2.msra.mxu0 0.0
    %716 = vmatprep.mubr.f32.mxu0 0.0
    %717 = vmatmul.mubr.f32.gmra.mxu0 %v181
    %v718 = vpop.f32.mrf.mxu0
    %v719 = vadd.f32 %v650, %v718
    %v720 = vpop.f32.mrf.mxu0
    %721 = vmatprep.mubr.f32.mxu0 0.0
    %722 = vmatmul.mubr.f32.gmra.mxu0 %v184
    %v723 = vpop.f32.mrf.mxu0
    %v724 = vadd.f32 %v650, %v723
    %v725 = vpop.f32.mrf.mxu0
    %726 = vdwg.mxu0
    %v727 = vsel %vm90, %v719, 0.0
    %728 = vadd.xlane.f32.xlu0 %v727
    %v729 = vpop.xlane.xlu0 %728
    %v730 = vsel %vm90, %v724, 0.0
    %731 = vadd.xlane.f32.xlu0 %v730
    %v732 = vpop.xlane.xlu0 %731
    %v733 = vmul.f32 %v729, %v267
    %v734 = vmul.f32 %v732, %v267
    %v735 = vsub.f32 %v719, %v733
    %v736 = vsub.f32 %v724, %v734
    %v737 = vmul.f32 %v735, %v735
    %v738 = vmul.f32 %v736, %v736
    %v739 = vsel %vm90, %v737, 0.0
    %740 = vadd.xlane.f32.xlu0 %v739
    %v741 = vpop.xlane.xlu0 %740
    %v742 = vsel %vm90, %v738, 0.0
    %743 = vadd.xlane.f32.xlu0 %v742
    %v744 = vpop.xlane.xlu0 %743
    %v745 = vmul.f32 %v741, %v267
    %v746 = vmul.f32 %v744, %v267
    %v747 = vadd.f32 %v745, 1e-05
    %v748 = vadd.f32 %v746, 1e-05
    %v749 = vrsqrt.pop %v747
    %v750 = vrsqrt.pop %v748
    %v751 = vmul.f32 %v735, %v749
    %v752 = vmul.f32 %v736, %v750
    %s753 = scalar_lea.vmem %s4, 2
    %v754 = vld [vmem:[%s753] sm:$0x1]
    %v756 = vlaneseq
    %v757 = vshrl.u32 %v756, 7
    %v758 = vsub.s32 0, %v757
    %v759 = vrot.slane %v754, %v758
    %v761 = vmul.f32 %v751, %v759
    %v762 = vmul.f32 %v752, %v759
    %s763 = scalar_lea.vmem %s5, 2
    %v764 = vld [vmem:[%s763] sm:$0x1]
    %v766 = vlaneseq
    %v767 = vshrl.u32 %v766, 7
    %v768 = vsub.s32 0, %v767
    %v769 = vrot.slane %v764, %v768
    %v771 = vadd.f32 %v761, %v769
    %v772 = vadd.f32 %v762, %v769
    %v773 = vmul.f32 %v771, 0.5
    %v774 = vmul.f32 %v772, 0.5
    %v775 = vmul.f32 %v771, 0.70710677
    %v776 = vmul.f32 %v772, 0.70710677
    %v777 = verf.f32.pop %v775
    %v778 = verf.f32.pop %v776
    %v779 = vadd.f32 %v777, 1.0
    %v780 = vadd.f32 %v778, 1.0
    %v781 = vmul.f32 %v773, %v779
    %v782 = vmul.f32 %v774, %v780
    %s783 = scalar_lea.vmem [#allocation8], 32
    %v784 = vld [vmem:[%s783] sm:$0xff]
    %v785 = vld [vmem:[%s783 + $0x8] sm:$0xff]
    %vm786 = vcmp.ge.f32.partialorder %v784, 0.1
    %vm787 = vcmp.ge.f32.partialorder %v785, 0.1
    %v788 = vmul.f32 %v781, 1.1111112
    %v789 = vmul.f32 %v782, 1.1111112
    %v790 = vsel %vm786, %v788, 0.0
    %v791 = vsel %vm787, %v789, 0.0
    %792 = vst.msk [vmem:[#allocation10] sm:$0xff] %vm90, %v790
    %793 = vst.msk [vmem:[#allocation10 + $0x8] sm:$0xff] %vm90, %v791
    // Predicated region
    $region46: #{tpu_custom_call.1} parent=1 // pred_check
      _
    $region47: #{tpu_custom_call.1} parent=1 // pred_check_branch
      %795 = sbr.rel (0) target = $region49
    $region48: #{tpu_custom_call.1} parent=1 // pred_region
      %s797 = ssub.s32 256, 256
      %798 = vsyncadd [#allocation4], %s797
      %s799 = sshll.u32 [#allocation10], 4
      %s800 = int_to_ptr.vmem [resolvable:$true] %s799
      %805 = dma.vmem_to_hbm [thread:$0]  %s800, 256, %s7, [#allocation4], 128, 128, 8
    $region49: #{tpu_custom_call.1} parent=1 // pred_fallthru
      _
    // Predicated region
    $region50: #{tpu_custom_call.1} parent=1 // pred_check
      _
    $region51: #{tpu_custom_call.1} parent=1 // pred_check_branch
      %807 = sbr.rel (0) target = $region53
    $region52: #{tpu_custom_call.1} parent=1 // pred_region
      %808 = dma.done [#allocation4], 256
    $region53: #{tpu_custom_call.1} parent=1 // pred_fallthru
      _
    %809 = vsyncpa [#allocation3], 1
    %810 = vsyncpa [#allocation6], 1
    %811 = vsyncpa [#allocation9], 1
    %812 = vsyncpa [#allocation4], 1

</llo_original>
